<compile_context>
chip_gen: v7x
topology: tpu7x:2x2x1
jax: 0.10.0
libtpu: 0.0.40
codegen_flags: <defaults>
</compile_context>

<pallas_src>
import functools
import math

import jax
import jax.numpy as jnp
from jax.experimental import pallas as pl
from jax.experimental.pallas import tpu as pltpu


def _cdiv(a, b):
    return -(-a // b)


def _round_up(x, m):
    return ((x + m - 1) // m) * m


def _pick_batch_tile(b, target=64):
    """Return (tb, b_pad): tb is a multiple of 8 dividing b_pad (or tb == b for tiny b)."""
    if b <= 8:
        return b, b
    b_pad = _round_up(b, 8)
    tb = min(target, b_pad)
    tb -= tb % 8
    while b_pad % tb:
        tb -= 8
    # v7x has 2 TensorCores sharding the "parallel" axis: keep >= 2 batch blocks.
    if b_pad // tb == 1 and b_pad >= 16:
        half = (b_pad // 2) - ((b_pad // 2) % 8)
        if half >= 8:
            tb = half
            while b_pad % tb:
                tb -= 8
    return tb, b_pad


def _pick_point_tile(p, a, tb, itemsize, target_points=2048, budget_bytes=8 << 20):
    """Return (tp, p_pad): tp points per reduction step with tp*a % 128 == 0."""
    unit = 128 // math.gcd(128, a)          # smallest tp making the lane dim 128-aligned
    # VMEM cap for the pipelined inputs: 2 inputs x 2 buffers x (tb * tp * a * itemsize).
    cap = budget_bytes // (4 * tb * a * itemsize)
    cap = max(unit, (cap // unit) * unit)
    target = max(unit, min((target_points // unit) * unit, cap))
    n_tiles = _cdiv(p, target)
    tp = _round_up(_cdiv(p, n_tiles), unit)
    return tp, n_tiles * tp


def _pointwise_dist_kernel(x_ref, y_ref, w_ref, o_ref, acc_ref, *, n_axes, inv_p):
    # x_ref, y_ref : (tb, tp*A) interleaved slabs (native dtype)
    # w_ref        : (1, tp*A) f32, 1.0 on one lane per point, 0.0 elsewhere
    # o_ref        : (tb, 1) f32 output block (written only in finalize)
    # acc_ref      : (tb, 1) f32 VMEM scratch, running distance sum per batch row
    pj = pl.program_id(1)

    @pl.when(pj == 0)
    def _init():
        acc_ref[...] = jnp.zeros_like(acc_ref)

    # Upcast on the fly (inputs may be bf16); keep the live set small.
    d = x_ref[...].astype(jnp.float32) - y_ref[...].astype(jnp.float32)
    sq = d * d

    # Group-sum the A interleaved components of each point into the point's
    # "center" lane p*A + c, using a window of XLU lane rotations (slot slack):
    #   s[:, p*A + c] = sum_a sq[:, p*A + a]
    # For odd A the window is symmetric, so the result is independent of the
    # rotation direction convention.
    lanes = sq.shape[-1]
    c = (n_axes - 1) // 2
    s = sq
    for r in range(-c, n_axes - c):
        if r == 0:
            continue
        s = s + pltpu.roll(sq, (lanes - r) % lanes, axis=1)

    # sqrt everywhere (EUP slack); w keeps lane p*A + c and zeroes the rest.
    dist = jnp.sqrt(s) * w_ref[...]
    acc_ref[...] += jnp.sum(dist, axis=1, keepdims=True)

    @pl.when(pj == pl.num_programs(1) - 1)
    def _finalize():
        o_ref[...] = acc_ref[...] * inv_p        # mean = sum * (1/P)


def pointwise_dist(x, y):
    """x: {'x': (B, P, A) array, ...};  y: (B, P, A) array  ->  (B,) array."""
    xa = x["x"]
    assert xa.shape == y.shape and xa.ndim == 3
    B, P, A = xa.shape

    out_dtype = jnp.result_type(xa.dtype, y.dtype)
    if not jnp.issubdtype(out_dtype, jnp.floating):
        out_dtype = jnp.float32
    itemsize = max(jnp.dtype(xa.dtype).itemsize, jnp.dtype(y.dtype).itemsize)

    tb, b_pad = _pick_batch_tile(B)
    tp, p_pad = _pick_point_tile(P, A, tb, itemsize)
    tpa = tp * A

    # Free row-major view; zero padding only materializes when shapes are ragged.
    xf = xa.reshape(B, P * A)
    yf = y.reshape(B, P * A)
    if b_pad != B or p_pad != P:
        pad = ((0, b_pad - B), (0, (p_pad - P) * A))
        xf = jnp.pad(xf, pad)      # zeros -> padded points contribute 0 distance
        yf = jnp.pad(yf, pad)

    # 0/1 selector row: one lane per point (the "center" component lane).
    center = (A - 1) // 2
    w = (jnp.arange(tpa, dtype=jnp.int32) % A == center).astype(jnp.float32)
    w = w.reshape(1, tpa)

    grid = (b_pad // tb, p_pad // tp)
    kernel = functools.partial(_pointwise_dist_kernel, n_axes=A, inv_p=float(1.0 / P))

    cost = pl.CostEstimate(
        flops=B * P * (3 * A + 2),
        transcendentals=B * P,
        bytes_accessed=2 * b_pad * p_pad * A * itemsize + b_pad * 4 + tpa * 4,
    )

    out = pl.pallas_call(
        kernel,
        out_shape=jax.ShapeDtypeStruct((b_pad, 1), jnp.float32),
        grid_spec=pltpu.PrefetchScalarGridSpec(
            num_scalar_prefetch=0,
            grid=grid,
            in_specs=[
                pl.BlockSpec((tb, tpa), lambda bi, pj: (bi, pj)),
                pl.BlockSpec((tb, tpa), lambda bi, pj: (bi, pj)),
                pl.BlockSpec((1, tpa), lambda bi, pj: (0, 0)),   # constant block, fetched once
            ],
            out_specs=pl.BlockSpec((tb, 1), lambda bi, pj: (bi, 0)),
            scratch_shapes=[pltpu.VMEM((tb, 1), jnp.float32)],
        ),
        compiler_params=pltpu.CompilerParams(
            dimension_semantics=("parallel", "arbitrary"),
        ),
        cost_estimate=cost,
    )(xf, yf, w)

    # Drop batch padding and match the input dtype (PyTorch parity).
    return out[:B, 0].astype(out_dtype)


def _reference(x, y):
    xa = x["x"].astype(jnp.float32)
    ya = y.astype(jnp.float32)
    return jnp.sqrt(jnp.sum((xa - ya) ** 2, axis=-1)).mean(axis=-1)


if __name__ == "__main__":
    key = jax.random.PRNGKey(0)
    k1, k2 = jax.random.split(key)
    batch, n_points, n_axes = 2, 16, 3
    x_arr = jax.random.normal(k1, (batch, n_points, n_axes), dtype=jnp.float32) * 10.0
    y_arr = jax.random.normal(k2, (batch, n_points, n_axes), dtype=jnp.float32) * 10.0

    x = {"x": x_arr}
    out = pointwise_dist(x, y_arr)
    out = jax.block_until_ready(out)

    ref = _reference(x, y_arr)
    assert out.shape == (batch,)
    assert jnp.allclose(out, ref, rtol=1e-5, atol=1e-5), (out, ref)
    print("KERNEL_OK")
</pallas_src>

<mosaic_0001>
module attributes {stable_mosaic.version = 11 : i64} {
  func.func @_pointwise_dist_kernel(%arg0: i32, %arg1: i32, %arg2: memref<2x384xf32, #tpu.memory_space<vmem>>, %arg3: memref<2x384xf32, #tpu.memory_space<vmem>>, %arg4: memref<1x384xf32, #tpu.memory_space<vmem>>, %arg5: memref<2x1xf32, #tpu.memory_space<vmem>>, %arg6: memref<2x1xf32, #tpu.memory_space<vmem>>) attributes {dimension_semantics = [#tpu.dimension_semantics<parallel>, #tpu.dimension_semantics<arbitrary>], iteration_bounds = array<i64: 1, 1>, scalar_prefetch = 0 : i64, scratch_operands = 1 : i64, tpu.core_type = #tpu.core_type<tc>, window_params = [{transform_indices = @transform_0, window_bounds = array<i64: 2, 384>}, {transform_indices = @transform_1, window_bounds = array<i64: 2, 384>}, {pipeline_mode = #tpu.pipeline_mode<synchronous>, transform_indices = @transform_2, window_bounds = array<i64: 1, 384>}, {transform_indices = @transform_3, window_bounds = array<i64: 2, 1>}]} {
    %c0_i32 = arith.constant 0 : i32
    %0 = arith.cmpi eq, %arg1, %c0_i32 : i32
    %1 = arith.extui %0 : i1 to i32
    %c0_i32_0 = arith.constant 0 : i32
    %2 = arith.cmpi ne, %1, %c0_i32_0 : i32
    scf.if %2 {
      %cst_12 = arith.constant 0.000000e+00 : f32
      %23 = vector.broadcast %cst_12 : f32 to vector<2x1xf32>
      %c0_13 = arith.constant 0 : index
      %c0_14 = arith.constant 0 : index
      %24 = vector.load %arg6[%c0_13, %c0_14] : memref<2x1xf32, #tpu.memory_space<vmem>>, vector<2x1xf32>
      tpu.vector_store %arg6[%c0_13, %c0_14], %23 {strides = array<i32>} : memref<2x1xf32, #tpu.memory_space<vmem>>, vector<2x1xf32>,
    } else {
    }
    %c0 = arith.constant 0 : index
    %c0_1 = arith.constant 0 : index
    %3 = vector.load %arg2[%c0, %c0_1] : memref<2x384xf32, #tpu.memory_space<vmem>>, vector<2x384xf32>
    %c0_2 = arith.constant 0 : index
    %c0_3 = arith.constant 0 : index
    %4 = vector.load %arg3[%c0_2, %c0_3] : memref<2x384xf32, #tpu.memory_space<vmem>>, vector<2x384xf32>
    %5 = arith.subf %3, %4 : vector<2x384xf32>
    %6 = arith.mulf %5, %5 : vector<2x384xf32>
    %c1_i32 = arith.constant 1 : i32
    %7 = tpu.dynamic_rotate %6 by %c1_i32 dim 1 : vector<2x384xf32>, i32 -> vector<2x384xf32>
    %8 = arith.addf %6, %7 : vector<2x384xf32>
    %c383_i32 = arith.constant 383 : i32
    %9 = tpu.dynamic_rotate %6 by %c383_i32 dim 1 : vector<2x384xf32>, i32 -> vector<2x384xf32>
    %10 = arith.addf %8, %9 : vector<2x384xf32>
    %11 = math.sqrt %10 : vector<2x384xf32>
    %c0_4 = arith.constant 0 : index
    %c0_5 = arith.constant 0 : index
    %12 = vector.load %arg4[%c0_4, %c0_5] : memref<1x384xf32, #tpu.memory_space<vmem>>, vector<1x384xf32>
    %13 = vector.broadcast %12 : vector<1x384xf32> to vector<2x384xf32>
    %14 = arith.mulf %11, %13 : vector<2x384xf32>
    %c0_6 = arith.constant 0 : index
    %c0_7 = arith.constant 0 : index
    %15 = vector.load %arg6[%c0_6, %c0_7] : memref<2x1xf32, #tpu.memory_space<vmem>>, vector<2x1xf32>
    %cst = arith.constant dense<0.000000e+00> : vector<2xf32>
    %16 = vector.multi_reduction <add>, %14, %cst [1] : vector<2x384xf32> to vector<2xf32>
    %17 = vector.shape_cast %16 : vector<2xf32> to vector<2x1xf32>
    %18 = arith.addf %15, %17 : vector<2x1xf32>
    %c0_8 = arith.constant 0 : index
    %c0_9 = arith.constant 0 : index
    %19 = vector.load %arg6[%c0_8, %c0_9] : memref<2x1xf32, #tpu.memory_space<vmem>>, vector<2x1xf32>
    tpu.vector_store %arg6[%c0_8, %c0_9], %18 {strides = array<i32>} : memref<2x1xf32, #tpu.memory_space<vmem>>, vector<2x1xf32>,
    %c0_i32_10 = arith.constant 0 : i32
    %20 = arith.cmpi eq, %arg1, %c0_i32_10 : i32
    %21 = arith.extui %20 : i1 to i32
    %c0_i32_11 = arith.constant 0 : i32
    %22 = arith.cmpi ne, %21, %c0_i32_11 : i32
    scf.if %22 {
      %c0_12 = arith.constant 0 : index
      %c0_13 = arith.constant 0 : index
      %23 = vector.load %arg6[%c0_12, %c0_13] : memref<2x1xf32, #tpu.memory_space<vmem>>, vector<2x1xf32>
      %cst_14 = arith.constant 6.250000e-02 : f32
      %24 = vector.broadcast %cst_14 : f32 to vector<2x1xf32>
      %25 = arith.mulf %23, %24 : vector<2x1xf32>
      %c0_15 = arith.constant 0 : index
      %c0_16 = arith.constant 0 : index
      %26 = vector.load %arg5[%c0_15, %c0_16] : memref<2x1xf32, #tpu.memory_space<vmem>>, vector<2x1xf32>
      tpu.vector_store %arg5[%c0_15, %c0_16], %25 {strides = array<i32>} : memref<2x1xf32, #tpu.memory_space<vmem>>, vector<2x1xf32>,
    } else {
    }
    return
  }
  func.func @transform_0(%arg0: i32, %arg1: i32) -> (i32, i32) {
    %c0_i32 = arith.constant 0 : i32
    return %arg0, %arg1 : i32, i32
  }
  func.func @transform_1(%arg0: i32, %arg1: i32) -> (i32, i32) {
    %c0_i32 = arith.constant 0 : i32
    return %arg0, %arg1 : i32, i32
  }
  func.func @transform_2(%arg0: i32, %arg1: i32) -> (i32, i32) {
    %c0_i32 = arith.constant 0 : i32
    %c0_i32_0 = arith.constant 0 : i32
    %c0_i32_1 = arith.constant 0 : i32
    return %c0_i32, %c0_i32_0 : i32, i32
  }
  func.func @transform_3(%arg0: i32, %arg1: i32) -> (i32, i32) {
    %c0_i32 = arith.constant 0 : i32
    %c0_i32_0 = arith.constant 0 : i32
    return %arg0, %c0_i32 : i32, i32
  }
}

</mosaic_0001>

<llo_original>
// kernel: tpu_custom_call.1
$region0: #{tpu_custom_call.1}
  #allocation0 [shape = 'u32[]', space=smem, size = 0x4, offset = 0x4, fixed_abs, tag = 'smem constant byte address 0x4 - core index']
  #allocation1 [shape = 'u32[144,128]{1,0:T(1,128)}', space=vmem, size = 0x12000, scoped, tag = 'internal scratch']
  #allocation2 [shape = 'f32[2,1]{1,0:T(2,128)}', space=vmem, size = 0x400, scoped, tag = 'scratch operand']
  %s0 = inlined_call_operand.hbm [shape: f32[2,384], index: 0, kind: input, shape index: {}]
  %s1 = inlined_call_operand.hbm [shape: f32[2,384], index: 1, kind: input, shape index: {}]
  %s2 = inlined_call_operand.vmem [shape: f32[1,384], index: 2, kind: input, shape index: {}]
  %s3 = inlined_call_operand.vmem [shape: f32[2,1], index: 3, kind: output, shape index: {}]
  %s4 = sld [smem:[#allocation0]]
  $region38: #{tpu_custom_call.1} parent=0
    _
  %s6 = ssub.s32 1, %s4
  %s7 = scalar_select 0, %s6, %s4
  $region1: #{tpu_custom_call.1} parent=0
    #allocation3 [shape = 'u8[3072]{0}', space=vmem, size = 0xc00, scoped, tag = 'input window, operand 0, single buffered']
    #allocation4 [shape = 's32[1]{0}', space=sflag, size = 0x4, scoped, tag = 'scoped memory for tpu_custom_call.1']
    #allocation5 [shape = 'u8[3072]{0}', space=vmem, size = 0xc00, scoped, tag = 'input window, operand 1, single buffered']
    #allocation6 [shape = 's32[1]{0}', space=sflag, size = 0x4, scoped, tag = 'scoped memory for tpu_custom_call.1']
    %8 = vsyncpa [#allocation4], 0
    %9 = vsyncpa [#allocation6], 0
    // Predicated region
    $region2: #{tpu_custom_call.1} parent=1 // pred_check
      _
    $region3: #{tpu_custom_call.1} parent=1 // pred_check_branch
      %11 = sbr.rel (0) target = $region5
    $region4: #{tpu_custom_call.1} parent=1 // pred_region
      %s13 = ssub.s32 96, 96
      %14 = vsyncadd [#allocation4], %s13
      %s16 = sshll.u32 [#allocation3], 4
      %s17 = int_to_ptr.vmem [resolvable:$true] %s16
      %19 = dma.hbm_to_vmem [thread:$0]  %s0, 96, %s17, [#allocation4]
    $region5: #{tpu_custom_call.1} parent=1 // pred_fallthru
      _
    // Predicated region
    $region6: #{tpu_custom_call.1} parent=1 // pred_check
      _
    $region7: #{tpu_custom_call.1} parent=1 // pred_check_branch
      %21 = sbr.rel (0) target = $region9
    $region8: #{tpu_custom_call.1} parent=1 // pred_region
      %s23 = ssub.s32 96, 96
      %24 = vsyncadd [#allocation6], %s23
      %s26 = sshll.u32 [#allocation5], 4
      %s27 = int_to_ptr.vmem [resolvable:$true] %s26
      %29 = dma.hbm_to_vmem [thread:$0]  %s1, 96, %s27, [#allocation6]
    $region9: #{tpu_custom_call.1} parent=1 // pred_fallthru
      _
    // Predicated region
    $region10: #{tpu_custom_call.1} parent=1 // pred_check
      _
    $region11: #{tpu_custom_call.1} parent=1 // pred_check_branch
      %31 = sbr.rel (0) target = $region13
    $region12: #{tpu_custom_call.1} parent=1 // pred_region
      _
    $region13: #{tpu_custom_call.1} parent=1 // pred_fallthru
      _
    // Predicated region
    $region14: #{tpu_custom_call.1} parent=1 // pred_check
      _
    $region15: #{tpu_custom_call.1} parent=1 // pred_check_branch
      %33 = sbr.rel (0) target = $region17
    $region16: #{tpu_custom_call.1} parent=1 // pred_region
      %34 = dma.done [#allocation4], 96
    $region17: #{tpu_custom_call.1} parent=1 // pred_fallthru
      _
    // Predicated region
    $region18: #{tpu_custom_call.1} parent=1 // pred_check
      _
    $region19: #{tpu_custom_call.1} parent=1 // pred_check_branch
      %36 = sbr.rel (0) target = $region21
    $region20: #{tpu_custom_call.1} parent=1 // pred_region
      %37 = dma.done [#allocation6], 96
    $region21: #{tpu_custom_call.1} parent=1 // pred_fallthru
      _
    %p38 = scmp.eq.s32.totalorder 0, 0
    // Predicated region
    $region22: #{tpu_custom_call.1} parent=1 // pred_check
      %p39 = pneg %p38
    $region23: #{tpu_custom_call.1} parent=1 // pred_check_branch
      %41 = sbr.rel (%p39) target = $region25
    $region24: #{tpu_custom_call.1} parent=1 // pred_region
      %vm42 = vcmask 1024
      %43 = vst.msk [vmem:[#allocation2] sm:$0x3] %vm42, 0.0
    $region25: #{tpu_custom_call.1} parent=1 // pred_fallthru
      _
    %v44 = vld [vmem:[#allocation3] sm:$0x3f]
    %v45 = vld [vmem:[#allocation5] sm:$0x3f]
    %v46 = vsub.f32 %v44, %v45
    %v47 = vmul.f32 %v46, %v46
    %v49 = vcombine.high %v47, %v47
    %v51 = vunpack.c.l.s4 1983009808
    %v52 = vunpack.c.0.s8 %v51
    %v53 = vlaneseq
    %v54 = vshrl.u32 %v53, 7
    %v55 = vsub.s32 %v52, %v54
    %v56 = vrot.slane %v47, %v55
    %v58 = vunpack.c.l.s4 1983009808
    %v59 = vunpack.c.0.s8 %v58
    %v60 = vlaneseq
    %v61 = vshrl.u32 %v60, 7
    %v62 = vsub.s32 %v59, %v61
    %v63 = vrot.slane %v49, %v62
    %v64 = vcombine.high %v56, %v56
    %68 = vrot.lane.b32.xlu0 %v56, 1
    %v69 = vpop.permute.xlu0 %68
    %70 = vrot.lane.b32.xlu0 %v64, 1
    %v71 = vpop.permute.xlu0 %70
    %72 = vrot.lane.b32.xlu0 %v63, 1
    %v73 = vpop.permute.xlu0 %72
    %v74 = vlaneseq
    %v75 = vand.u32 %v74, 127
    %vm76 = vcmp.lt.s32.totalorder %v75, 1
    %v77 = vsel %vm76, %v71, %v73
    %v78 = vsel %vm76, %v69, %v71
    %v79 = vsel %vm76, %v73, %v69
    %v83 = vcombine.low %v79, %v78
    %v85 = vunpack.c.l.s4 1983009808
    %v86 = vunpack.c.0.s8 %v85
    %v87 = vlaneseq
    %v88 = vshrl.u32 %v87, 7
    %v89 = vsub.s32 %v86, %v88
    %v90 = vrot.slane %v83, %v89
    %v92 = vunpack.c.l.s4 1983009808
    %v93 = vunpack.c.0.s8 %v92
    %v94 = vlaneseq
    %v95 = vshrl.u32 %v94, 7
    %v96 = vsub.s32 %v93, %v95
    %v97 = vrot.slane %v77, %v96
    %v98 = vcombine.low %v90, %v97
    %v100 = vadd.f32 %v47, %v98
    %101 = vrot.lane.b32.xlu0 %v56, 127
    %v102 = vpop.permute.xlu0 %101
    %103 = vrot.lane.b32.xlu0 %v64, 127
    %v104 = vpop.permute.xlu0 %103
    %105 = vrot.lane.b32.xlu0 %v63, 127
    %v106 = vpop.permute.xlu0 %105
    %vm107 = vcmp.lt.s32.totalorder %v75, 127
    %v108 = vsel %vm107, %v104, %v106
    %v109 = vsel %vm107, %v102, %v104
    %v110 = vsel %vm107, %v106, %v102
    %v114 = vcombine.low %v109, %v108
    %v116 = vunpack.c.l.s4 1983009808
    %v117 = vunpack.c.0.s8 %v116
    %v118 = vlaneseq
    %v119 = vshrl.u32 %v118, 7
    %v120 = vsub.s32 %v117, %v119
    %v121 = vrot.slane %v114, %v120
    %v123 = vunpack.c.l.s4 1983009808
    %v124 = vunpack.c.0.s8 %v123
    %v125 = vlaneseq
    %v126 = vshrl.u32 %v125, 7
    %v127 = vsub.s32 %v124, %v126
    %v128 = vrot.slane %v110, %v127
    %v129 = vcombine.low %v121, %v128
    %v131 = vadd.f32 %v100, %v129
    %v132 = vrsqrt.pop %v131
    %v133 = vmul.f32 %v131, %v132
    %vm134 = vcmp.eq.f32.partialorder %v131, inf
    %v135 = vsel %vm134, %v131, %v133
    %vm136 = vcmp.eq.f32.partialorder %v131, 0.0
    %v137 = vand.u32 %v131, 2147483648
    %v138 = vsel %vm136, %v137, %v135
    %v139 = vld [vmem:[%s2] sm:$0x7]
    %v141 = vlaneseq
    %v142 = vshrl.u32 %v141, 7
    %v143 = vsub.s32 0, %v142
    %v144 = vrot.slane %v139, %v143
    %v145 = vlaneseq
    %v146 = vshrl.u32 %v145, 7
    %v147 = vsub.s32 1, %v146
    %v148 = vrot.slane %v139, %v147
    %v149 = vlaneseq
    %v150 = vshrl.u32 %v149, 7
    %v151 = vsub.s32 2, %v150
    %v152 = vrot.slane %v139, %v151
    %v153 = vcombine.low %v144, %v148
    %v155 = vunpack.c.l.s4 1983009808
    %v156 = vunpack.c.0.s8 %v155
    %v157 = vlaneseq
    %v158 = vshrl.u32 %v157, 7
    %v159 = vsub.s32 %v156, %v158
    %v160 = vrot.slane %v153, %v159
    %v162 = vunpack.c.l.s4 1983009808
    %v163 = vunpack.c.0.s8 %v162
    %v164 = vlaneseq
    %v165 = vshrl.u32 %v164, 7
    %v166 = vsub.s32 %v163, %v165
    %v167 = vrot.slane %v152, %v166
    %v168 = vcombine.low %v160, %v167
    %v170 = vmul.f32 %v138, %v168
    %v171 = vld [vmem:[#allocation2] sm:$0x3]
    %v173 = vcombine.high %v170, %v170
    %v175 = vunpack.c.l.s4 1983009808
    %v176 = vunpack.c.0.s8 %v175
    %v177 = vlaneseq
    %v178 = vshrl.u32 %v177, 7
    %v179 = vsub.s32 %v176, %v178
    %v180 = vrot.slane %v170, %v179
    %v182 = vunpack.c.l.s4 1983009808
    %v183 = vunpack.c.0.s8 %v182
    %v184 = vlaneseq
    %v185 = vshrl.u32 %v184, 7
    %v186 = vsub.s32 %v183, %v185
    %v187 = vrot.slane %v173, %v186
    %v188 = vcombine.high %v180, %v180
    %vm192 = vcmask 1041408
    %v193 = vsel %vm192, %v180, 0.0
    %v194 = vsel %vm192, %v188, 0.0
    %v195 = vadd.f32 %v193, %v194
    %v196 = vsel %vm192, %v187, 0.0
    %v197 = vadd.f32 %v195, %v196
    %198 = vadd.xlane.f32.xlu0 %v197
    %v199 = vpop.xlane.xlu0 %198
    %v200 = vadd.f32 %v171, %v199
    %vm201 = vcmask 1024
    %202 = vst.msk [vmem:[#allocation2] sm:$0x3] %vm201, %v200
    // Predicated region
    $region26: #{tpu_custom_call.1} parent=1 // pred_check
      %p203 = pneg %p38
    $region27: #{tpu_custom_call.1} parent=1 // pred_check_branch
      %205 = sbr.rel (%p203) target = $region29
    $region28: #{tpu_custom_call.1} parent=1 // pred_region
      %v206 = vld [vmem:[#allocation2] sm:$0x3]
      %v207 = vmul.f32 %v206, 0.0625
      %208 = vst.msk [vmem:[%s3] sm:$0x3] %vm201, %v207
    $region29: #{tpu_custom_call.1} parent=1 // pred_fallthru
      _
    // Predicated region
    $region30: #{tpu_custom_call.1} parent=1 // pred_check
      _
    $region31: #{tpu_custom_call.1} parent=1 // pred_check_branch
      %210 = sbr.rel (0) target = $region33
    $region32: #{tpu_custom_call.1} parent=1 // pred_region
      _
    $region33: #{tpu_custom_call.1} parent=1 // pred_fallthru
      _
    // Predicated region
    $region34: #{tpu_custom_call.1} parent=1 // pred_check
      _
    $region35: #{tpu_custom_call.1} parent=1 // pred_check_branch
      %212 = sbr.rel (0) target = $region37
    $region36: #{tpu_custom_call.1} parent=1 // pred_region
      _
    $region37: #{tpu_custom_call.1} parent=1 // pred_fallthru
      _
    %213 = vsyncpa [#allocation4], 1
    %214 = vsyncpa [#allocation6], 1

</llo_original>
